<compile_context>
chip_gen: v6e
topology: v6e:2x2x1
jax: 0.10.0
libtpu: 0.0.40
codegen_flags: <defaults>
</compile_context>

<pallas_src>
import jax
import jax.numpy as jnp
from jax.experimental import pallas as pl
from jax.experimental.pallas import tpu as pltpu


def _pick_row_block(H, W, max_spatial=16 * 1024, min_blocks=4):
    """Pick `rows` (a divisor of H) such that S = rows*W is a multiple of 128
    (lane-dense output stores), S <= max_spatial (bounded per-step VMEM), and
    there are >= min_blocks row blocks when possible (keeps both v7x
    TensorCores busy at batch 1).

    Per-chip notes: v5e/v6e (128 MiB VMEM) tolerate max_spatial ~32K for a few
    extra %, v7x (64 MiB, 2 TCs) wants <= ~16K and >= 4 blocks; 16K/4 is safe
    and near-optimal everywhere, so it is the single default used here.
    """
    cands = [r for r in range(1, H + 1)
             if H % r == 0 and (r * W) % 128 == 0 and r * W <= max_spatial]
    if cands:
        for nb in (min_blocks, 2):
            multi = [r for r in cands if H // r >= nb]
            if multi:
                return max(multi)
        return max(cands)
    # TODO(synk): cdiv grid + masked last block for shapes with no lane-dense
    # divisor; the full-height fallback below is always a legal BlockSpec
    # (block == full array dims) but loses lane-dense stores / tiling.
    return H


@jax.jit
def va_model_forward(x_nchw, weight_oihw, bias):
    """Equivalent of VaModel(conv_index=0).forward: Conv2d(3->64, 3x3, pad=1)."""
    N, Cin, H, W = x_nchw.shape
    Cout, Cin_w, KH, KW = weight_oihw.shape
    assert Cin_w == Cin and (KH, KW) == (3, 3), "VaModel conv_index=0 is a 3x3 conv"
    K = KH * KW * Cin

    rows = _pick_row_block(H, W)
    n_rb = H // rows
    S = rows * W                  # flattened output spatial per row block (lane-dense)
    S_win = S + 2 * W + 2         # halo'd flattened input window per row block

    # ---- wrapper: H-pad ('same'), flatten spatial, add 1-element guards, and
    # slice one overlapping halo window per row block.  No K=27 im2col tensor
    # is ever written to HBM; window duplication is only (2W+2)/S.
    x_ph = jnp.pad(x_nchw, ((0, 0), (0, 0), (1, 1), (0, 0)))          # (N, Cin, H+2, W)
    x_flat = x_ph.reshape(N, Cin, (H + 2) * W)
    x_flat = jnp.pad(x_flat, ((0, 0), (0, 0), (1, 1)))                # guards for corner taps
    x_win = jnp.stack(
        [x_flat[:, :, r * S: r * S + S_win] for r in range(n_rb)],
        axis=1)                                                       # (N, n_rb, Cin, S_win)

    # OIHW -> (Cout, ky, kx, Cin) -> (Cout, K): matches the in-kernel tap order.
    w_mat = jnp.transpose(weight_oihw, (0, 2, 3, 1)).reshape(Cout, K)
    b_col = bias.reshape(Cout, 1)

    # Horizontal-edge masks: the flat windows carry no W padding, so the kx=0 /
    # kx=2 taps pick up the neighbouring image row's last/first column at
    # col==0 / col==W-1; those positions are multiplied by zero in the kernel.
    col = jnp.arange(S, dtype=jnp.int32) % W
    masks = jnp.stack([(col != 0), (col != W - 1)]).astype(x_nchw.dtype)   # (2, S)

    def kernel(x_ref, w_ref, b_ref, m_ref, o_ref, patch_ref):
        # x_ref:     (1, 1, Cin, S_win) halo'd flattened input window (streamed)
        # w_ref:     (Cout, K)          weights (resident)
        # b_ref:     (Cout, 1)          bias (resident)
        # m_ref:     (2, S)             horizontal edge masks (resident)
        # o_ref:     (1, Cout, S)       lane-dense NCHW output slab
        # patch_ref: (K, S)             VMEM scratch: im2col patch for this tile
        for ky in range(KH):
            for kx in range(KW):
                t = ky * KW + kx
                # Static-offset lane slice: tap[s] = window[s + ky*W + kx].
                tap = x_ref[0, 0, :, pl.ds(ky * W + kx, S)]            # (Cin, S)
                if kx == 0:
                    tap = tap * m_ref[0:1, :]                          # zero where col == 0
                elif kx == KW - 1:
                    tap = tap * m_ref[1:2, :]                          # zero where col == W-1
                patch_ref[pl.ds(t * Cin, Cin), :] = tap
        # One K-deep MXU contraction per tile (HBM-bound op, MXU has slack;
        # a single dot keeps the partial-sum traffic off the VMEM ld/st path).
        acc = jax.lax.dot_general(
            w_ref[...], patch_ref[...],
            dimension_numbers=(((1,), (0,)), ((), ())),
            preferred_element_type=jnp.float32)                        # (Cout, S)
        o_ref[0] = (acc + b_ref[...]).astype(o_ref.dtype)

    itemsize = jnp.dtype(x_nchw.dtype).itemsize
    cost = pl.CostEstimate(
        flops=2 * N * Cout * K * H * W,
        transcendentals=0,
        bytes_accessed=(x_win.size + N * Cout * H * W + w_mat.size
                        + b_col.size + masks.size) * itemsize)

    out_flat = pl.pallas_call(
        kernel,
        out_shape=jax.ShapeDtypeStruct((N, Cout, H * W), x_nchw.dtype),
        grid_spec=pltpu.PrefetchScalarGridSpec(
            num_scalar_prefetch=0,
            grid=(N, n_rb),
            in_specs=[
                pl.BlockSpec((1, 1, Cin, S_win), lambda b, r: (b, r, 0, 0)),  # streamed
                pl.BlockSpec((Cout, K), lambda b, r: (0, 0)),                 # resident
                pl.BlockSpec((Cout, 1), lambda b, r: (0, 0)),                 # resident
                pl.BlockSpec((2, S), lambda b, r: (0, 0)),                    # resident
            ],
            out_specs=pl.BlockSpec((1, Cout, S), lambda b, r: (b, 0, r)),
            scratch_shapes=[pltpu.VMEM((K, S), jnp.float32)],
        ),
        compiler_params=pltpu.CompilerParams(
            # Both axes are independent (no cross-step state).  On v7x megacore
            # the row axis (>= 4 blocks via _pick_row_block) keeps the second
            # TensorCore busy even at batch 1; no-op on v5e/v6e.
            dimension_semantics=("parallel", "parallel"),
            vmem_limit_bytes=32 * 1024 * 1024,
        ),
        cost_estimate=cost,
    )(x_win, w_mat, b_col, masks)

    # (N, Cout, H*W) -> (N, Cout, H, W): contiguous reshape, no data movement.
    return out_flat.reshape(N, Cout, H, W)


if __name__ == "__main__":
    key = jax.random.PRNGKey(0)
    k_x, k_w, k_b = jax.random.split(key, 3)

    # Small shapes consistent with the module: NCHW RGB batch; VGG16 conv1 has
    # 64 output channels, 3x3 kernel, padding 1.
    N, Cin, H, W = 2, 3, 16, 16
    Cout = 64

    x = jax.random.normal(k_x, (N, Cin, H, W), jnp.float32)
    weight = jax.random.normal(k_w, (Cout, Cin, 3, 3), jnp.float32) * 0.1
    bias = jax.random.normal(k_b, (Cout,), jnp.float32) * 0.1

    out = jax.block_until_ready(va_model_forward(x, weight, bias))
    assert out.shape == (N, Cout, H, W)

    # Reference check against XLA's conv (same NCHW / OIHW convention as torch).
    ref = jax.lax.conv_general_dilated(
        x, weight, window_strides=(1, 1), padding=((1, 1), (1, 1)),
        dimension_numbers=("NCHW", "OIHW", "NCHW"),
        preferred_element_type=jnp.float32) + bias[None, :, None, None]
    assert jnp.allclose(out, ref, atol=1e-3, rtol=1e-3), "mismatch vs reference conv"

    print("KERNEL_OK")
</pallas_src>

<mosaic_0001>
module attributes {stable_mosaic.version = 11 : i64} {
  func.func @kernel(%arg0: i32, %arg1: i32, %arg2: memref<1x1x3x162xf32, #tpu.memory_space<vmem>>, %arg3: memref<64x27xf32, #tpu.memory_space<vmem>>, %arg4: memref<64x1xf32, #tpu.memory_space<vmem>>, %arg5: memref<2x128xf32, #tpu.memory_space<vmem>>, %arg6: memref<1x64x128xf32, #tpu.memory_space<vmem>>, %arg7: memref<27x128xf32, #tpu.memory_space<vmem>>) attributes {dimension_semantics = [#tpu.dimension_semantics<parallel>, #tpu.dimension_semantics<parallel>], iteration_bounds = array<i64: 2, 2>, scalar_prefetch = 0 : i64, scratch_operands = 1 : i64, tpu.core_type = #tpu.core_type<tc>, window_params = [{transform_indices = @transform_0, window_bounds = array<i64: 1, 1, 3, 162>}, {pipeline_mode = #tpu.pipeline_mode<synchronous>, transform_indices = @transform_1, window_bounds = array<i64: 64, 27>}, {pipeline_mode = #tpu.pipeline_mode<synchronous>, transform_indices = @transform_2, window_bounds = array<i64: 64, 1>}, {pipeline_mode = #tpu.pipeline_mode<synchronous>, transform_indices = @transform_3, window_bounds = array<i64: 2, 128>}, {transform_indices = @transform_4, window_bounds = array<i64: 1, 64, 128>}]} {
    %c0 = arith.constant 0 : index
    %c0_0 = arith.constant 0 : index
    %c0_1 = arith.constant 0 : index
    %c0_2 = arith.constant 0 : index
    %0 = vector.load %arg2[%c0, %c0_0, %c0_1, %c0_2] : memref<1x1x3x162xf32, #tpu.memory_space<vmem>>, vector<1x1x3x128xf32>
    %1 = vector.shape_cast %0 : vector<1x1x3x128xf32> to vector<3x128xf32>
    %c0_3 = arith.constant 0 : index
    %c0_4 = arith.constant 0 : index
    %2 = vector.load %arg5[%c0_3, %c0_4] : memref<2x128xf32, #tpu.memory_space<vmem>>, vector<1x128xf32>
    %3 = vector.broadcast %2 : vector<1x128xf32> to vector<3x128xf32>
    %4 = arith.mulf %1, %3 : vector<3x128xf32>
    %c0_5 = arith.constant 0 : index
    %c0_6 = arith.constant 0 : index
    %5 = vector.load %arg7[%c0_5, %c0_6] : memref<27x128xf32, #tpu.memory_space<vmem>>, vector<3x128xf32>
    tpu.vector_store %arg7[%c0_5, %c0_6], %4 {strides = array<i32>} : memref<27x128xf32, #tpu.memory_space<vmem>>, vector<3x128xf32>,
    %c0_7 = arith.constant 0 : index
    %c0_8 = arith.constant 0 : index
    %c0_9 = arith.constant 0 : index
    %c1 = arith.constant 1 : index
    %6 = vector.load %arg2[%c0_7, %c0_8, %c0_9, %c1] : memref<1x1x3x162xf32, #tpu.memory_space<vmem>>, vector<1x1x3x128xf32>
    %7 = vector.shape_cast %6 : vector<1x1x3x128xf32> to vector<3x128xf32>
    %c3 = arith.constant 3 : index
    %c0_10 = arith.constant 0 : index
    %8 = vector.load %arg7[%c3, %c0_10] : memref<27x128xf32, #tpu.memory_space<vmem>>, vector<3x128xf32>
    tpu.vector_store %arg7[%c3, %c0_10], %7 {strides = array<i32>} : memref<27x128xf32, #tpu.memory_space<vmem>>, vector<3x128xf32>,
    %c0_11 = arith.constant 0 : index
    %c0_12 = arith.constant 0 : index
    %c0_13 = arith.constant 0 : index
    %c2 = arith.constant 2 : index
    %9 = vector.load %arg2[%c0_11, %c0_12, %c0_13, %c2] : memref<1x1x3x162xf32, #tpu.memory_space<vmem>>, vector<1x1x3x128xf32>
    %10 = vector.shape_cast %9 : vector<1x1x3x128xf32> to vector<3x128xf32>
    %c1_14 = arith.constant 1 : index
    %c0_15 = arith.constant 0 : index
    %11 = vector.load %arg5[%c1_14, %c0_15] : memref<2x128xf32, #tpu.memory_space<vmem>>, vector<1x128xf32>
    %12 = vector.broadcast %11 : vector<1x128xf32> to vector<3x128xf32>
    %13 = arith.mulf %10, %12 : vector<3x128xf32>
    %c6 = arith.constant 6 : index
    %c0_16 = arith.constant 0 : index
    %14 = vector.load %arg7[%c6, %c0_16] : memref<27x128xf32, #tpu.memory_space<vmem>>, vector<3x128xf32>
    tpu.vector_store %arg7[%c6, %c0_16], %13 {strides = array<i32>} : memref<27x128xf32, #tpu.memory_space<vmem>>, vector<3x128xf32>,
    %c0_17 = arith.constant 0 : index
    %c0_18 = arith.constant 0 : index
    %c0_19 = arith.constant 0 : index
    %c16 = arith.constant 16 : index
    %15 = vector.load %arg2[%c0_17, %c0_18, %c0_19, %c16] : memref<1x1x3x162xf32, #tpu.memory_space<vmem>>, vector<1x1x3x128xf32>
    %16 = vector.shape_cast %15 : vector<1x1x3x128xf32> to vector<3x128xf32>
    %c0_20 = arith.constant 0 : index
    %c0_21 = arith.constant 0 : index
    %17 = vector.load %arg5[%c0_20, %c0_21] : memref<2x128xf32, #tpu.memory_space<vmem>>, vector<1x128xf32>
    %18 = vector.broadcast %17 : vector<1x128xf32> to vector<3x128xf32>
    %19 = arith.mulf %16, %18 : vector<3x128xf32>
    %c9 = arith.constant 9 : index
    %c0_22 = arith.constant 0 : index
    %20 = vector.load %arg7[%c9, %c0_22] : memref<27x128xf32, #tpu.memory_space<vmem>>, vector<3x128xf32>
    tpu.vector_store %arg7[%c9, %c0_22], %19 {strides = array<i32>} : memref<27x128xf32, #tpu.memory_space<vmem>>, vector<3x128xf32>,
    %c0_23 = arith.constant 0 : index
    %c0_24 = arith.constant 0 : index
    %c0_25 = arith.constant 0 : index
    %c17 = arith.constant 17 : index
    %21 = vector.load %arg2[%c0_23, %c0_24, %c0_25, %c17] : memref<1x1x3x162xf32, #tpu.memory_space<vmem>>, vector<1x1x3x128xf32>
    %22 = vector.shape_cast %21 : vector<1x1x3x128xf32> to vector<3x128xf32>
    %c12 = arith.constant 12 : index
    %c0_26 = arith.constant 0 : index
    %23 = vector.load %arg7[%c12, %c0_26] : memref<27x128xf32, #tpu.memory_space<vmem>>, vector<3x128xf32>
    tpu.vector_store %arg7[%c12, %c0_26], %22 {strides = array<i32>} : memref<27x128xf32, #tpu.memory_space<vmem>>, vector<3x128xf32>,
    %c0_27 = arith.constant 0 : index
    %c0_28 = arith.constant 0 : index
    %c0_29 = arith.constant 0 : index
    %c18 = arith.constant 18 : index
    %24 = vector.load %arg2[%c0_27, %c0_28, %c0_29, %c18] : memref<1x1x3x162xf32, #tpu.memory_space<vmem>>, vector<1x1x3x128xf32>
    %25 = vector.shape_cast %24 : vector<1x1x3x128xf32> to vector<3x128xf32>
    %c1_30 = arith.constant 1 : index
    %c0_31 = arith.constant 0 : index
    %26 = vector.load %arg5[%c1_30, %c0_31] : memref<2x128xf32, #tpu.memory_space<vmem>>, vector<1x128xf32>
    %27 = vector.broadcast %26 : vector<1x128xf32> to vector<3x128xf32>
    %28 = arith.mulf %25, %27 : vector<3x128xf32>
    %c15 = arith.constant 15 : index
    %c0_32 = arith.constant 0 : index
    %29 = vector.load %arg7[%c15, %c0_32] : memref<27x128xf32, #tpu.memory_space<vmem>>, vector<3x128xf32>
    tpu.vector_store %arg7[%c15, %c0_32], %28 {strides = array<i32>} : memref<27x128xf32, #tpu.memory_space<vmem>>, vector<3x128xf32>,
    %c0_33 = arith.constant 0 : index
    %c0_34 = arith.constant 0 : index
    %c0_35 = arith.constant 0 : index
    %c32 = arith.constant 32 : index
    %30 = vector.load %arg2[%c0_33, %c0_34, %c0_35, %c32] : memref<1x1x3x162xf32, #tpu.memory_space<vmem>>, vector<1x1x3x128xf32>
    %31 = vector.shape_cast %30 : vector<1x1x3x128xf32> to vector<3x128xf32>
    %c0_36 = arith.constant 0 : index
    %c0_37 = arith.constant 0 : index
    %32 = vector.load %arg5[%c0_36, %c0_37] : memref<2x128xf32, #tpu.memory_space<vmem>>, vector<1x128xf32>
    %33 = vector.broadcast %32 : vector<1x128xf32> to vector<3x128xf32>
    %34 = arith.mulf %31, %33 : vector<3x128xf32>
    %c18_38 = arith.constant 18 : index
    %c0_39 = arith.constant 0 : index
    %35 = vector.load %arg7[%c18_38, %c0_39] : memref<27x128xf32, #tpu.memory_space<vmem>>, vector<3x128xf32>
    tpu.vector_store %arg7[%c18_38, %c0_39], %34 {strides = array<i32>} : memref<27x128xf32, #tpu.memory_space<vmem>>, vector<3x128xf32>,
    %c0_40 = arith.constant 0 : index
    %c0_41 = arith.constant 0 : index
    %c0_42 = arith.constant 0 : index
    %c33 = arith.constant 33 : index
    %36 = vector.load %arg2[%c0_40, %c0_41, %c0_42, %c33] : memref<1x1x3x162xf32, #tpu.memory_space<vmem>>, vector<1x1x3x128xf32>
    %37 = vector.shape_cast %36 : vector<1x1x3x128xf32> to vector<3x128xf32>
    %c21 = arith.constant 21 : index
    %c0_43 = arith.constant 0 : index
    %38 = vector.load %arg7[%c21, %c0_43] : memref<27x128xf32, #tpu.memory_space<vmem>>, vector<3x128xf32>
    tpu.vector_store %arg7[%c21, %c0_43], %37 {strides = array<i32>} : memref<27x128xf32, #tpu.memory_space<vmem>>, vector<3x128xf32>,
    %c0_44 = arith.constant 0 : index
    %c0_45 = arith.constant 0 : index
    %c0_46 = arith.constant 0 : index
    %c34 = arith.constant 34 : index
    %39 = vector.load %arg2[%c0_44, %c0_45, %c0_46, %c34] : memref<1x1x3x162xf32, #tpu.memory_space<vmem>>, vector<1x1x3x128xf32>
    %40 = vector.shape_cast %39 : vector<1x1x3x128xf32> to vector<3x128xf32>
    %c1_47 = arith.constant 1 : index
    %c0_48 = arith.constant 0 : index
    %41 = vector.load %arg5[%c1_47, %c0_48] : memref<2x128xf32, #tpu.memory_space<vmem>>, vector<1x128xf32>
    %42 = vector.broadcast %41 : vector<1x128xf32> to vector<3x128xf32>
    %43 = arith.mulf %40, %42 : vector<3x128xf32>
    %c24 = arith.constant 24 : index
    %c0_49 = arith.constant 0 : index
    %44 = vector.load %arg7[%c24, %c0_49] : memref<27x128xf32, #tpu.memory_space<vmem>>, vector<3x128xf32>
    tpu.vector_store %arg7[%c24, %c0_49], %43 {strides = array<i32>} : memref<27x128xf32, #tpu.memory_space<vmem>>, vector<3x128xf32>,
    %c0_50 = arith.constant 0 : index
    %c0_51 = arith.constant 0 : index
    %45 = vector.load %arg3[%c0_50, %c0_51] : memref<64x27xf32, #tpu.memory_space<vmem>>, vector<64x27xf32>
    %c0_52 = arith.constant 0 : index
    %c0_53 = arith.constant 0 : index
    %46 = vector.load %arg7[%c0_52, %c0_53] : memref<27x128xf32, #tpu.memory_space<vmem>>, vector<27x128xf32>
    %cst = arith.constant dense<0.000000e+00> : vector<64x128xf32>
    %47 = tpu.matmul %45, %46, %cst {dimension_numbers = #tpu.dot_dimension_numbers<[1], [0], [0], [1], [0, 0, 1, 1], [], []>} : vector<64x27xf32>, vector<27x128xf32>, vector<64x128xf32> -> vector<64x128xf32>
    %c0_54 = arith.constant 0 : index
    %c0_55 = arith.constant 0 : index
    %48 = vector.load %arg4[%c0_54, %c0_55] : memref<64x1xf32, #tpu.memory_space<vmem>>, vector<64x1xf32>
    %49 = vector.broadcast %48 : vector<64x1xf32> to vector<64x128xf32>
    %50 = arith.addf %47, %49 : vector<64x128xf32>
    %c0_56 = arith.constant 0 : index
    %c0_57 = arith.constant 0 : index
    %c0_58 = arith.constant 0 : index
    %51 = vector.load %arg6[%c0_56, %c0_57, %c0_58] : memref<1x64x128xf32, #tpu.memory_space<vmem>>, vector<1x64x128xf32>
    %52 = vector.shape_cast %51 : vector<1x64x128xf32> to vector<64x128xf32>
    %53 = vector.shape_cast %50 : vector<64x128xf32> to vector<1x64x128xf32>
    tpu.vector_store %arg6[%c0_56, %c0_57, %c0_58], %53 {strides = array<i32>} : memref<1x64x128xf32, #tpu.memory_space<vmem>>, vector<1x64x128xf32>,
    return
  }
  func.func @transform_0(%arg0: i32, %arg1: i32) -> (i32, i32, i32, i32) {
    %c0_i32 = arith.constant 0 : i32
    %c0_i32_0 = arith.constant 0 : i32
    %c0_i32_1 = arith.constant 0 : i32
    return %arg0, %arg1, %c0_i32, %c0_i32_0 : i32, i32, i32, i32
  }
  func.func @transform_1(%arg0: i32, %arg1: i32) -> (i32, i32) {
    %c0_i32 = arith.constant 0 : i32
    %c0_i32_0 = arith.constant 0 : i32
    %c0_i32_1 = arith.constant 0 : i32
    return %c0_i32, %c0_i32_0 : i32, i32
  }
  func.func @transform_2(%arg0: i32, %arg1: i32) -> (i32, i32) {
    %c0_i32 = arith.constant 0 : i32
    %c0_i32_0 = arith.constant 0 : i32
    %c0_i32_1 = arith.constant 0 : i32
    return %c0_i32, %c0_i32_0 : i32, i32
  }
  func.func @transform_3(%arg0: i32, %arg1: i32) -> (i32, i32) {
    %c0_i32 = arith.constant 0 : i32
    %c0_i32_0 = arith.constant 0 : i32
    %c0_i32_1 = arith.constant 0 : i32
    return %c0_i32, %c0_i32_0 : i32, i32
  }
  func.func @transform_4(%arg0: i32, %arg1: i32) -> (i32, i32, i32) {
    %c0_i32 = arith.constant 0 : i32
    %c0_i32_0 = arith.constant 0 : i32
    return %arg0, %c0_i32, %arg1 : i32, i32, i32
  }
}

</mosaic_0001>

<llo_original>
// kernel: va_model_forward.1
$region0: #{va_model_forward.1}
  #allocation0 [shape = 'u32[]', space=smem, size = 0x4, offset = 0x4, fixed_abs, tag = 'smem constant byte address 0x4 - core index']
  #allocation1 [shape = 'u32[144,128]{1,0:T(1,128)}', space=vmem, size = 0x12000, scoped, tag = 'internal scratch']
  #allocation2 [shape = 'f32[27,128]{1,0:T(8,128)}', space=vmem, size = 0x4000, scoped, tag = 'scratch operand']
  %s0 = inlined_call_operand.vmem [shape: f32[2,2,3,162], index: 0, kind: input, shape index: {}]
  %s1 = inlined_call_operand.vmem [shape: f32[64,27], index: 1, kind: input, shape index: {}]
  %s2 = inlined_call_operand.vmem [shape: f32[64,1], index: 2, kind: input, shape index: {}]
  %s3 = inlined_call_operand.vmem [shape: f32[2,128], index: 3, kind: input, shape index: {}]
  %s4 = inlined_call_operand.vmem [shape: f32[2,64,256], index: 4, kind: output, shape index: {}]
  %s5 = sld [smem:[#allocation0]]
  $region83: #{va_model_forward.1} parent=0
    _
  %s7 = ssub.s32 1, %s5
  %s8 = scalar_select 0, %s7, %s5
  $region1: #{va_model_forward.1} parent=0
    #allocation3 [shape = 'u8[65536]{0}', space=vmem, size = 0x10000, scoped, tag = 'output window, operand 0']
    loop: start=0, step=1, limit=6
    $region2: #{va_model_forward.1} parent=1 // loop_pre_header
      _
    $region3: #{va_model_forward.1} parent=1 // loop_header
      %s10 = sphi 0, %s14
      %p11 = scmp.ge.s32.totalorder %s10, 6
      %s17 = sphi 0, %s29
      %s18 = sphi 0, %s25
      %s19 = sphi 0, %s17
      %s20 = sphi 0, %s18
      %s21 = sphi 0, %s19
      %s22 = sphi 0, %s20
      %s34 = sphi 0, %s36
      %s37 = sphi 0, %s34
      %s38 = sphi 0, %s37
      %s54 = sphi 0, %s38
      %s58 = sphi 0, %s58
      %s60 = sphi 0, %s58
      %s61 = sphi 0, %s60
      %s75 = sphi 0, %s61
      %s79 = sphi 0, %s79
      %s81 = sphi 0, %s79
      %s82 = sphi 0, %s81
      %s96 = sphi 0, %s82
      %s100 = sphi 0, %s100
      %s102 = sphi 0, %s100
      %s103 = sphi 0, %s102
      %s117 = sphi 0, %s103
      %s125 = sphi 0, %s127
      %s128 = sphi 0, %s125
      %s129 = sphi 0, %s128
      %s145 = sphi 0, %s129
    $region4: #{va_model_forward.1} parent=1 // loop_header_branch
      %13 = sbr.rel (%p11) target = $region8
    $region5: #{va_model_forward.1} parent=1 // loop_body
      %s15 = ssub.s32 %s10, 1
      %s16 = ssub.s32 %s10, 2
      %s23 = sadd.s32 1, %s18
      %p24 = scmp.ge.s32.totalorder %s23, 2
      %s25 = scalar_select %p24, 0, %s23
      %s26 = sadd.s32 1, %s17
      %s27 = scalar_select %p24, %s26, %s17
      %p28 = scmp.ge.s32.totalorder %s27, 2
      %s29 = scalar_select %p28, 0, %s27
      %s30 = ssub.s32 %s17, %s29
      %s31 = ssub.s32 %s18, %s25
      %s32 = sor.u32 %s30, %s31
      %p33 = scmp.eq.s32.totalorder %s32, 0
      %s35 = sadd.s32 %s34, 1
      %s36 = scalar_select %p33, %s34, %s35
      %p39 = pneg %p33
      %p40 = scmp.eq.s32.totalorder %s10, 3
      %p41 = por %p39, %p40
      %p42 = scmp.ne.s32.totalorder %s34, %s37
      %p43 = scmp.eq.s32.totalorder %s10, 0
      %p44 = por %p42, %p43
      %p45 = scmp.ne.s32.totalorder %s34, %s37
      %p46 = scmp.eq.s32.totalorder %s15, 3
      %p47 = por %p45, %p46
      %p48 = scmp.ne.s32.totalorder %s37, %s38
      %p49 = scmp.eq.s32.totalorder %s15, 0
      %p50 = por %p48, %p49
      %p51 = scmp.ne.s32.totalorder %s37, %s38
      %p52 = scmp.eq.s32.totalorder %s16, 3
      %p53 = por %p51, %p52
      %p55 = scmp.ne.s32.totalorder %s38, %s54
      %p56 = scmp.eq.s32.totalorder %s16, 0
      %p57 = por %p55, %p56
      %s59 = sadd.s32 %s58, 1
      %p62 = scmp.eq.s32.totalorder %s10, 3
      %p63 = scmp.ne.s32.totalorder %s58, %s60
      %p64 = scmp.eq.s32.totalorder %s10, 0
      %p65 = por %p63, %p64
      %p66 = scmp.ne.s32.totalorder %s58, %s60
      %p67 = scmp.eq.s32.totalorder %s15, 3
      %p68 = por %p66, %p67
      %p69 = scmp.ne.s32.totalorder %s60, %s61
      %p70 = scmp.eq.s32.totalorder %s15, 0
      %p71 = por %p69, %p70
      %p72 = scmp.ne.s32.totalorder %s60, %s61
      %p73 = scmp.eq.s32.totalorder %s16, 3
      %p74 = por %p72, %p73
      %p76 = scmp.ne.s32.totalorder %s61, %s75
      %p77 = scmp.eq.s32.totalorder %s16, 0
      %p78 = por %p76, %p77
      %s80 = sadd.s32 %s79, 1
      %p83 = scmp.eq.s32.totalorder %s10, 3
      %p84 = scmp.ne.s32.totalorder %s79, %s81
      %p85 = scmp.eq.s32.totalorder %s10, 0
      %p86 = por %p84, %p85
      %p87 = scmp.ne.s32.totalorder %s79, %s81
      %p88 = scmp.eq.s32.totalorder %s15, 3
      %p89 = por %p87, %p88
      %p90 = scmp.ne.s32.totalorder %s81, %s82
      %p91 = scmp.eq.s32.totalorder %s15, 0
      %p92 = por %p90, %p91
      %p93 = scmp.ne.s32.totalorder %s81, %s82
      %p94 = scmp.eq.s32.totalorder %s16, 3
      %p95 = por %p93, %p94
      %p97 = scmp.ne.s32.totalorder %s82, %s96
      %p98 = scmp.eq.s32.totalorder %s16, 0
      %p99 = por %p97, %p98
      %s101 = sadd.s32 %s100, 1
      %p104 = scmp.eq.s32.totalorder %s10, 3
      %p105 = scmp.ne.s32.totalorder %s100, %s102
      %p106 = scmp.eq.s32.totalorder %s10, 0
      %p107 = por %p105, %p106
      %p108 = scmp.ne.s32.totalorder %s100, %s102
      %p109 = scmp.eq.s32.totalorder %s15, 3
      %p110 = por %p108, %p109
      %p111 = scmp.ne.s32.totalorder %s102, %s103
      %p112 = scmp.eq.s32.totalorder %s15, 0
      %p113 = por %p111, %p112
      %p114 = scmp.ne.s32.totalorder %s102, %s103
      %p115 = scmp.eq.s32.totalorder %s16, 3
      %p116 = por %p114, %p115
      %p118 = scmp.ne.s32.totalorder %s103, %s117
      %p119 = scmp.eq.s32.totalorder %s16, 0
      %p120 = por %p118, %p119
      %s121 = ssub.s32 %s17, %s29
      %s122 = ssub.s32 %s18, %s25
      %s123 = sor.u32 %s121, %s122
      %p124 = scmp.eq.s32.totalorder %s123, 0
      %s126 = sadd.s32 %s125, 1
      %s127 = scalar_select %p124, %s125, %s126
      %p130 = pneg %p124
      %p131 = scmp.eq.s32.totalorder %s10, 3
      %p132 = por %p130, %p131
      %p133 = scmp.ne.s32.totalorder %s125, %s128
      %p134 = scmp.eq.s32.totalorder %s10, 0
      %p135 = por %p133, %p134
      %p136 = scmp.ne.s32.totalorder %s125, %s128
      %p137 = scmp.eq.s32.totalorder %s15, 3
      %p138 = por %p136, %p137
      %p139 = scmp.ne.s32.totalorder %s128, %s129
      %p140 = scmp.eq.s32.totalorder %s15, 0
      %p141 = por %p139, %p140
      %p142 = scmp.ne.s32.totalorder %s128, %s129
      %p143 = scmp.eq.s32.totalorder %s16, 3
      %p144 = por %p142, %p143
      %p146 = scmp.ne.s32.totalorder %s129, %s145
      %p147 = scmp.eq.s32.totalorder %s16, 0
      %p148 = por %p146, %p147
      %p149 = scmp.le.s32.totalorder 1, %s10
      %p150 = scmp.lt.s32.totalorder %s10, 5
      %p151 = pnand %p149, %p150
      %p152 = pneg %p151
      // Predicated region
      $region9: #{va_model_forward.1} parent=5 // pred_check
        _
      $region10: #{va_model_forward.1} parent=5 // pred_check_branch
        %154 = sbr.rel (%p151) target = $region12
      $region11: #{va_model_forward.1} parent=5 // pred_region
        %s155 = ssub.s32 %s10, 1
        // Predicated region
        $region13: #{va_model_forward.1} parent=11 // pred_check
          %p156 = pneg %p71
        $region14: #{va_model_forward.1} parent=11 // pred_check_branch
          %158 = sbr.rel (%p156) target = $region16
        $region15: #{va_model_forward.1} parent=11 // pred_region
          _
        $region16: #{va_model_forward.1} parent=11 // pred_fallthru
          _
        // Predicated region
        $region17: #{va_model_forward.1} parent=11 // pred_check
          %p159 = pneg %p92
        $region18: #{va_model_forward.1} parent=11 // pred_check_branch
          %161 = sbr.rel (%p159) target = $region20
        $region19: #{va_model_forward.1} parent=11 // pred_region
          _
        $region20: #{va_model_forward.1} parent=11 // pred_fallthru
          _
        // Predicated region
        $region21: #{va_model_forward.1} parent=11 // pred_check
          %p162 = pneg %p113
        $region22: #{va_model_forward.1} parent=11 // pred_check_branch
          %164 = sbr.rel (%p162) target = $region24
        $region23: #{va_model_forward.1} parent=11 // pred_region
          _
        $region24: #{va_model_forward.1} parent=11 // pred_fallthru
          _
      $region12: #{va_model_forward.1} parent=5 // pred_fallthru
        _
      %p165 = scmp.lt.s32.totalorder %s10, 4
      // Predicated region
      $region25: #{va_model_forward.1} parent=5 // pred_check
        %p166 = pneg %p165
      $region26: #{va_model_forward.1} parent=5 // pred_check_branch
        %168 = sbr.rel (%p166) target = $region28
      $region27: #{va_model_forward.1} parent=5 // pred_region
        // Predicated region
        $region29: #{va_model_forward.1} parent=27 // pred_check
          %p169 = pneg %p44
        $region30: #{va_model_forward.1} parent=27 // pred_check_branch
          %171 = sbr.rel (%p169) target = $region32
        $region31: #{va_model_forward.1} parent=27 // pred_region
          %p172 = scmp.lt.s32.totalorder %s17, 1
          %s173 = scalar_select %p172, %s17, 1
          %p174 = scmp.lt.s32.totalorder %s18, 1
          %s175 = scalar_select %p174, %s18, 1
          %s176 = smul.addr %s175, 2
          %s177 = smul.addr %s173, 4
          %s178 = sadd.s32 %s176, %s177
          %s179 = smul.addr %s178, 4
          %s180 = scalar_lea.vmem %s0, %s179
        $region32: #{va_model_forward.1} parent=27 // pred_fallthru
          _
      $region28: #{va_model_forward.1} parent=5 // pred_fallthru
        _
      %p181 = scmp.le.s32.totalorder 1, %s10
      %p182 = scmp.lt.s32.totalorder %s10, 5
      %p183 = pnand %p181, %p182
      %p184 = pneg %p183
      // Predicated region
      $region33: #{va_model_forward.1} parent=5 // pred_check
        _
      $region34: #{va_model_forward.1} parent=5 // pred_check_branch
        %186 = sbr.rel (%p183) target = $region36
      $region35: #{va_model_forward.1} parent=5 // pred_region
        %s187 = ssub.s32 %s10, 1
        %p188 = scmp.lt.s32.totalorder %s19, 1
        %s189 = scalar_select %p188, %s19, 1
        %p190 = scmp.lt.s32.totalorder %s20, 1
        %s191 = scalar_select %p190, %s20, 1
        %s192 = smul.addr %s191, 2
        %s193 = smul.addr %s189, 4
        %s194 = sadd.s32 %s192, %s193
        %s195 = smul.addr %s194, 4
        %s196 = scalar_lea.vmem %s0, %s195
        %p197 = pneg %p50
        %p198 = pneg %p47
        %p199 = pneg %p71
        %p200 = pneg %p68
        %p201 = pneg %p92
        %p202 = pneg %p89
        %p203 = pneg %p113
        %p204 = pneg %p110
        %p205 = pneg %p141
        %p206 = pneg %p138
        %s207 = sand.u32 %s128, 1
        %s208 = sand.u32 %s128, 1
        %s209 = smul.addr %s208, 64
        %s210 = scalar_lea.vmem [#allocation3], %s209
        %p211 = scmp.lt.s32.totalorder %s19, 1
        %s212 = scalar_select %p211, %s19, 1
        %p213 = scmp.lt.s32.totalorder %s20, 1
        %s214 = scalar_select %p213, %s20, 1
        %s215 = smul.addr %s214, 2
        %s216 = smul.addr %s212, 4
        %s217 = sadd.s32 %s215, %s216
        %s218 = smul.addr %s217, 4
        %s219 = scalar_lea.vmem %s0, %s218
        %v220 = vld [vmem:[%s219] sm:$0x7]
        %v221 = vld [vmem:[%s3] sm:$0x1]
        %v222 = vlaneseq
        %v223 = vshrl.u32 %v222, 7
        %v224 = vsub.s32 0, %v223
        %v225 = vrot.slane %v221, %v224
        %v226 = vmul.f32 %v220, %v225
        %227 = vst [vmem:[#allocation2] sm:$0x7] %v226
        %v228 = vld [vmem:[%s219] sm:$0x77]
        %v230 = vcombine.high %v228, %v228
        %231 = vrot.lane.b32.xlu0 %v228, 127
        %v232 = vpop.permute.xlu0 %231
        %233 = vrot.lane.b32.xlu0 %v230, 127
        %v234 = vpop.permute.xlu0 %233
        %vm235 = vcmask 1039360
        %v236 = vsel %vm235, %v232, %v234
        %238 = vst [vmem:[#allocation2 + $0x3] sm:$0x7] %v236
        %v239 = vld [vmem:[%s219] sm:$0x77]
        %v240 = vld [vmem:[%s3 + $0x1] sm:$0x1]
        %v241 = vlaneseq
        %v242 = vshrl.u32 %v241, 7
        %v243 = vsub.s32 0, %v242
        %v244 = vrot.slane %v240, %v243
        %246 = vrot.lane.b32.xlu0 %v244, 2
        %v247 = vpop.permute.xlu0 %246
        %v248 = vrot.slane %v247, 4
        %vm249 = vcmask 15360
        %v250 = vsel %vm249, %v248, %v247
        %v252 = vmul.f32 %v239, %v250
        %v254 = vcombine.high %v252, %v252
        %255 = vrot.lane.b32.xlu0 %v252, 126
        %v256 = vpop.permute.xlu0 %255
        %257 = vrot.lane.b32.xlu0 %v254, 126
        %v258 = vpop.permute.xlu0 %257
        %vm259 = vcmask 1031168
        %v260 = vsel %vm259, %v256, %v258
        %262 = vst [vmem:[#allocation2 + $0x6] sm:$0x7] %v260
        %v263 = vld [vmem:[%s219] sm:$0x77]
        %v264 = vld [vmem:[%s3] sm:$0x1]
        %v265 = vlaneseq
        %v266 = vshrl.u32 %v265, 7
        %v267 = vsub.s32 0, %v266
        %v268 = vrot.slane %v264, %v267
        %270 = vrot.lane.b32.xlu0 %v268, 16
        %v271 = vpop.permute.xlu0 %270
        %v272 = vrot.slane %v271, 4
        %vm273 = vcmask 130048
        %v274 = vsel %vm273, %v272, %v271
        %v276 = vmul.f32 %v263, %v274
        %v278 = vcombine.high %v276, %v276
        %279 = vrot.lane.b32.xlu0 %v276, 112
        %v280 = vpop.permute.xlu0 %279
        %281 = vrot.lane.b32.xlu0 %v278, 112
        %v282 = vpop.permute.xlu0 %281
        %vm283 = vcmask 916480
        %v284 = vsel %vm283, %v280, %v282
        %286 = vst [vmem:[#allocation2 + $0x9] sm:$0x7] %v284
        %v287 = vld [vmem:[%s219] sm:$0x77]
        %v289 = vcombine.high %v287, %v287
        %290 = vrot.lane.b32.xlu0 %v287, 111
        %v291 = vpop.permute.xlu0 %290
        %292 = vrot.lane.b32.xlu0 %v289, 111
        %v293 = vpop.permute.xlu0 %292
        %vm294 = vcmask 908288
        %v295 = vsel %vm294, %v291, %v293
        %297 = vst [vmem:[#allocation2 + $0xc] sm:$0x7] %v295
        %v298 = vld [vmem:[%s219] sm:$0x77]
        %v299 = vld [vmem:[%s3 + $0x1] sm:$0x1]
        %v300 = vlaneseq
        %v301 = vshrl.u32 %v300, 7
        %v302 = vsub.s32 0, %v301
        %v303 = vrot.slane %v299, %v302
        %305 = vrot.lane.b32.xlu0 %v303, 18
        %v306 = vpop.permute.xlu0 %305
        %v307 = vrot.slane %v306, 4
        %vm308 = vcmask 146432
        %v309 = vsel %vm308, %v307, %v306
        %v311 = vmul.f32 %v298, %v309
        %v313 = vcombine.high %v311, %v311
        %314 = vrot.lane.b32.xlu0 %v311, 110
        %v315 = vpop.permute.xlu0 %314
        %316 = vrot.lane.b32.xlu0 %v313, 110
        %v317 = vpop.permute.xlu0 %316
        %vm318 = vcmask 900096
        %v319 = vsel %vm318, %v315, %v317
        %321 = vst [vmem:[#allocation2 + $0xf] sm:$0x7] %v319
        %v322 = vld [vmem:[%s219] sm:$0x77]
        %v323 = vld [vmem:[%s3] sm:$0x1]
        %v324 = vlaneseq
        %v325 = vshrl.u32 %v324, 7
        %v326 = vsub.s32 0, %v325
        %v327 = vrot.slane %v323, %v326
        %329 = vrot.lane.b32.xlu0 %v327, 32
        %v330 = vpop.permute.xlu0 %329
        %v331 = vrot.slane %v330, 4
        %vm332 = vcmask 261120
        %v333 = vsel %vm332, %v331, %v330
        %v335 = vmul.f32 %v322, %v333
        %v337 = vcombine.high %v335, %v335
        %338 = vrot.lane.b32.xlu0 %v335, 96
        %v339 = vpop.permute.xlu0 %338
        %340 = vrot.lane.b32.xlu0 %v337, 96
        %v341 = vpop.permute.xlu0 %340
        %vm342 = vcmask 785408
        %v343 = vsel %vm342, %v339, %v341
        %345 = vst [vmem:[#allocation2 + $0x12] sm:$0x7] %v343
        %v346 = vld [vmem:[%s219] sm:$0x77]
        %v348 = vcombine.high %v346, %v346
        %349 = vrot.lane.b32.xlu0 %v346, 95
        %v350 = vpop.permute.xlu0 %349
        %351 = vrot.lane.b32.xlu0 %v348, 95
        %v352 = vpop.permute.xlu0 %351
        %vm353 = vcmask 777216
        %v354 = vsel %vm353, %v350, %v352
        %356 = vst [vmem:[#allocation2 + $0x15] sm:$0x7] %v354
        %v357 = vld [vmem:[%s219] sm:$0x77]
        %v358 = vld [vmem:[%s3 + $0x1] sm:$0x1]
        %v359 = vlaneseq
        %v360 = vshrl.u32 %v359, 7
        %v361 = vsub.s32 0, %v360
        %v362 = vrot.slane %v358, %v361
        %364 = vrot.lane.b32.xlu0 %v362, 34
        %v365 = vpop.permute.xlu0 %364
        %v366 = vrot.slane %v365, 4
        %vm367 = vcmask 277504
        %v368 = vsel %vm367, %v366, %v365
        %v370 = vmul.f32 %v357, %v368
        %v372 = vcombine.high %v370, %v370
        %373 = vrot.lane.b32.xlu0 %v370, 94
        %v374 = vpop.permute.xlu0 %373
        %375 = vrot.lane.b32.xlu0 %v372, 94
        %v376 = vpop.permute.xlu0 %375
        %vm377 = vcmask 769024
        %v378 = vsel %vm377, %v374, %v376
        %380 = vst [vmem:[#allocation2 + $0x18] sm:$0x7] %v378
        %v381 = vld [vmem:[%s1] sm:$0xff]
        %v382 = vld [vmem:[%s1 + $0x8] sm:$0xff]
        %v383 = vld [vmem:[%s1 + $0x10] sm:$0xff]
        %v384 = vld [vmem:[%s1 + $0x18] sm:$0xff]
        %v385 = vld [vmem:[%s1 + $0x20] sm:$0xff]
        %v386 = vld [vmem:[%s1 + $0x28] sm:$0xff]
        %v387 = vld [vmem:[%s1 + $0x30] sm:$0xff]
        %v388 = vld [vmem:[%s1 + $0x38] sm:$0xff]
        %v389 = vld [vmem:[#allocation2] sm:$0xff]
        %v390 = vld [vmem:[#allocation2 + $0x8] sm:$0xff]
        %v391 = vld [vmem:[#allocation2 + $0x10] sm:$0xff]
        %v392 = vld [vmem:[#allocation2 + $0x18] sm:$0x7]
        %v393 = vld [vmem:[%s2] sm:$0xff]
        %v394 = vld [vmem:[%s2 + $0x8] sm:$0xff]
        %v395 = vld [vmem:[%s2 + $0x10] sm:$0xff]
        %v396 = vld [vmem:[%s2 + $0x18] sm:$0xff]
        %v397 = vld [vmem:[%s2 + $0x20] sm:$0xff]
        %v398 = vld [vmem:[%s2 + $0x28] sm:$0xff]
        %v399 = vld [vmem:[%s2 + $0x30] sm:$0xff]
        %v400 = vld [vmem:[%s2 + $0x38] sm:$0xff]
        %402 = vset.pattern.permute.xlu0 0
        %403 = vperm.xlu0 %402, %v393
        %v404 = vpop.permute.xlu0 %403
        %407 = vset.pattern.permute.xlu0 0
        %408 = vperm.xlu0 %407, %v394
        %v409 = vpop.permute.xlu0 %408
        %412 = vset.pattern.permute.xlu0 0
        %413 = vperm.xlu0 %412, %v395
        %v414 = vpop.permute.xlu0 %413
        %417 = vset.pattern.permute.xlu0 0
        %418 = vperm.xlu0 %417, %v396
        %v419 = vpop.permute.xlu0 %418
        %422 = vset.pattern.permute.xlu0 0
        %423 = vperm.xlu0 %422, %v397
        %v424 = vpop.permute.xlu0 %423
        %427 = vset.pattern.permute.xlu0 0
        %428 = vperm.xlu0 %427, %v398
        %v429 = vpop.permute.xlu0 %428
        %432 = vset.pattern.permute.xlu0 0
        %433 = vperm.xlu0 %432, %v399
        %v434 = vpop.permute.xlu0 %433
        %437 = vset.pattern.permute.xlu0 0
        %438 = vperm.xlu0 %437, %v400
        %v439 = vpop.permute.xlu0 %438
        %vm441 = vcmask 220160
        %v443 = vsel %vm441, %v381, 0
        %v446 = vsel %vm441, %v382, 0
        %v449 = vsel %vm441, %v383, 0
        %v452 = vsel %vm441, %v384, 0
        %v455 = vsel %vm441, %v385, 0
        %v458 = vsel %vm441, %v386, 0
        %v461 = vsel %vm441, %v387, 0
        %v464 = vsel %vm441, %v388, 0
        %vm466 = vcmask 1042432
        %v468 = vsel %vm466, %v392, 0
        %470 = vmatprep.subr.mxu0 0.0
        %471 = vmatpush1.msra.mxu0 0.0
        %472 = vmatprep.subr.mxu0 0.0
        %473 = vmatpush1.msra.mxu0 0.0
        %474 = vmatprep.subr.mxu0 0.0
        %475 = vmatpush1.msra.mxu0 0.0
        %476 = vmatprep.subr.mxu0 0.0
        %477 = vmatpush1.msra.mxu0 0.0
        %478 = vmatprep.subr.mxu0 0.0
        %479 = vmatpush1.msra.mxu0 0.0
        %480 = vmatprep.subr.mxu0 0.0
        %481 = vmatpush1.msra.mxu0 0.0
        %482 = vmatprep.subr.mxu0 0.0
        %483 = vmatpush1.msra.mxu0 0.0
        %484 = vmatprep.subr.mxu0 0.0
        %485 = vmatpush1.msra.mxu0 0.0
        %486 = vmatprep.subr.mxu0 0.0
        %487 = vmatpush1.msra.mxu0 0.0
        %488 = vmatprep.subr.mxu0 0.0
        %489 = vmatpush1.msra.mxu0 0.0
        %490 = vmatprep.subr.mxu0 0.0
        %491 = vmatpush1.msra.mxu0 0.0
        %492 = vmatprep.subr.mxu0 0.0
        %493 = vmatpush1.msra.mxu0 0.0
        %494 = vmatprep.subr.mxu0 0.0
        %495 = vmatpush1.msra.mxu0 %v468
        %496 = vmatprep.subr.mxu0 0.0
        %497 = vmatpush1.msra.mxu0 %v391
        %498 = vmatprep.subr.mxu0 0.0
        %499 = vmatpush1.msra.mxu0 %v390
        %500 = vmatprep.subr.mxu0 0.0
        %501 = vmatpush1.msra.mxu0 %v389
        %502 = vmatprep.subr.mxu0 0.0
        %503 = vmatpush2.msra.mxu0 0.0
        %504 = vmatprep.subr.mxu0 0.0
        %505 = vmatpush2.msra.mxu0 0.0
        %506 = vmatprep.subr.mxu0 0.0
        %507 = vmatpush2.msra.mxu0 0.0
        %508 = vmatprep.subr.mxu0 0.0
        %509 = vmatpush2.msra.mxu0 0.0
        %510 = vmatprep.subr.mxu0 0.0
        %511 = vmatpush2.msra.mxu0 0.0
        %512 = vmatprep.subr.mxu0 0.0
        %513 = vmatpush2.msra.mxu0 0.0
        %514 = vmatprep.subr.mxu0 0.0
        %515 = vmatpush2.msra.mxu0 0.0
        %516 = vmatprep.subr.mxu0 0.0
        %517 = vmatpush2.msra.mxu0 0.0
        %518 = vmatprep.subr.mxu0 0.0
        %519 = vmatpush2.msra.mxu0 0.0
        %520 = vmatprep.subr.mxu0 0.0
        %521 = vmatpush2.msra.mxu0 0.0
        %522 = vmatprep.subr.mxu0 0.0
        %523 = vmatpush2.msra.mxu0 0.0
        %524 = vmatprep.subr.mxu0 0.0
        %525 = vmatpush2.msra.mxu0 0.0
        %526 = vmatprep.subr.mxu0 0.0
        %527 = vmatpush2.msra.mxu0 0.0
        %528 = vmatprep.subr.mxu0 0.0
        %529 = vmatpush2.msra.mxu0 0.0
        %530 = vmatprep.subr.mxu0 0.0
        %531 = vmatpush2.msra.mxu0 0.0
        %532 = vmatprep.subr.mxu0 0.0
        %533 = vmatpush2.msra.mxu0 0.0
        %534 = vmatprep.mubr.f32.mxu0 0.0
        %535 = vmatmul.mubr.f32.gmra.mxu0 %v443
        %v536 = vpop.f32.mrf.mxu0
        %v537 = vadd.f32 %v404, %v536
        %v538 = vpop.f32.mrf.mxu0
        %539 = vmatprep.mubr.f32.mxu0 0.0
        %540 = vmatmul.mubr.f32.gmra.mxu0 %v446
        %v541 = vpop.f32.mrf.mxu0
        %v542 = vadd.f32 %v409, %v541
        %v543 = vpop.f32.mrf.mxu0
        %544 = vmatprep.mubr.f32.mxu0 0.0
        %545 = vmatmul.mubr.f32.gmra.mxu0 %v449
        %v546 = vpop.f32.mrf.mxu0
        %v547 = vadd.f32 %v414, %v546
        %v548 = vpop.f32.mrf.mxu0
        %549 = vmatprep.mubr.f32.mxu0 0.0
        %550 = vmatmul.mubr.f32.gmra.mxu0 %v452
        %v551 = vpop.f32.mrf.mxu0
        %v552 = vadd.f32 %v419, %v551
        %v553 = vpop.f32.mrf.mxu0
        %554 = vmatprep.mubr.f32.mxu0 0.0
        %555 = vmatmul.mubr.f32.gmra.mxu0 %v455
        %v556 = vpop.f32.mrf.mxu0
        %v557 = vadd.f32 %v424, %v556
        %v558 = vpop.f32.mrf.mxu0
        %559 = vmatprep.mubr.f32.mxu0 0.0
        %560 = vmatmul.mubr.f32.gmra.mxu0 %v458
        %v561 = vpop.f32.mrf.mxu0
        %v562 = vadd.f32 %v429, %v561
        %v563 = vpop.f32.mrf.mxu0
        %564 = vmatprep.mubr.f32.mxu0 0.0
        %565 = vmatmul.mubr.f32.gmra.mxu0 %v461
        %v566 = vpop.f32.mrf.mxu0
        %v567 = vadd.f32 %v434, %v566
        %v568 = vpop.f32.mrf.mxu0
        %569 = vmatprep.mubr.f32.mxu0 0.0
        %570 = vmatmul.mubr.f32.gmra.mxu0 %v464
        %v571 = vpop.f32.mrf.mxu0
        %v572 = vadd.f32 %v439, %v571
        %v573 = vpop.f32.mrf.mxu0
        %574 = vdwg.mxu0
        %575 = vst [vmem:[%s210] sm:$0xff] %v537
        %576 = vst [vmem:[%s210 + $0x8] sm:$0xff] %v542
        %577 = vst [vmem:[%s210 + $0x10] sm:$0xff] %v547
        %578 = vst [vmem:[%s210 + $0x18] sm:$0xff] %v552
        %579 = vst [vmem:[%s210 + $0x20] sm:$0xff] %v557
        %580 = vst [vmem:[%s210 + $0x28] sm:$0xff] %v562
        %581 = vst [vmem:[%s210 + $0x30] sm:$0xff] %v567
        %582 = vst [vmem:[%s210 + $0x38] sm:$0xff] %v572
        %s583 = sand.u32 %s128, 1
        %s584 = sand.u32 %s128, 1
        %s585 = smul.addr %s584, 64
        %s586 = scalar_lea.vmem [#allocation3], %s585
        // Predicated region
        $region37: #{va_model_forward.1} parent=35 // pred_check
          %p587 = pneg %p138
        $region38: #{va_model_forward.1} parent=35 // pred_check_branch
          %589 = sbr.rel (%p587) target = $region40
        $region39: #{va_model_forward.1} parent=35 // pred_region
          %s590 = smul.addr %s19, 16
          %s591 = sadd.s32 %s20, %s590
          %s592 = smul.addr %s591, 8
          %s593 = scalar_lea.vmem %s4, %s592
          // Predicated region
          $region41: #{va_model_forward.1} parent=39 // pred_check
            _
          $region42: #{va_model_forward.1} parent=39 // pred_check_branch
            %595 = sbr.rel (0) target = $region44
          $region43: #{va_model_forward.1} parent=39 // pred_region
            // Predicated region
            $region45: #{va_model_forward.1} parent=43 // pred_check
              _
            $region46: #{va_model_forward.1} parent=43 // pred_check_branch
              %597 = sbr.rel (0) target = $region48
            $region47: #{va_model_forward.1} parent=43 // pred_region
              // Predicated region
              $region60: #{va_model_forward.1} parent=47 // pred_check
                _
              $region61: #{va_model_forward.1} parent=47 // pred_check_branch
                %627 = sbr.rel (0) target = $region63
              $region62: #{va_model_forward.1} parent=47 // pred_region
                loop: start=0, step=1, limit=1
                $region64: #{va_model_forward.1} parent=62 // loop_pre_header
                  _
                $region65: #{va_model_forward.1} parent=62 // loop_header
                  %s629 = sphi 0, %s633
                  %p630 = scmp.ge.s32.totalorder %s629, 1
                  %s634 = sphi %s586, %s586
                  %s635 = sphi %s593, %s593
                $region66: #{va_model_forward.1} parent=62 // loop_header_branch
                  %632 = sbr.rel (%p630) target = $region70
                $region67: #{va_model_forward.1} parent=62 // loop_body
                  %v636 = vld [vmem:[%s634] sm:$0xff]
                  %637 = vst [vmem:[%s635] sm:$0xff] %v636
                  %v638 = vld [vmem:[%s634 + $0x8] sm:$0xff]
                  %639 = vst [vmem:[%s635 + $0x10] sm:$0xff] %v638
                  %v640 = vld [vmem:[%s634 + $0x10] sm:$0xff]
                  %641 = vst [vmem:[%s635 + $0x20] sm:$0xff] %v640
                  %v642 = vld [vmem:[%s634 + $0x18] sm:$0xff]
                  %643 = vst [vmem:[%s635 + $0x30] sm:$0xff] %v642
                  %v644 = vld [vmem:[%s634 + $0x20] sm:$0xff]
                  %645 = vst [vmem:[%s635 + $0x40] sm:$0xff] %v644
                  %v646 = vld [vmem:[%s634 + $0x28] sm:$0xff]
                  %647 = vst [vmem:[%s635 + $0x50] sm:$0xff] %v646
                  %v648 = vld [vmem:[%s634 + $0x30] sm:$0xff]
                  %649 = vst [vmem:[%s635 + $0x60] sm:$0xff] %v648
                  %v650 = vld [vmem:[%s634 + $0x38] sm:$0xff]
                  %651 = vst [vmem:[%s635 + $0x70] sm:$0xff] %v650
                $region68: #{va_model_forward.1} parent=62 // loop_footer
                  %s633 = sadd.s32 1, %s629
                $region69: #{va_model_forward.1} parent=62 // loop_footer_branch
                  %628 = sbr.rel target = $region65
                $region70: #{va_model_forward.1} parent=62 // loop_exit
                  _
              $region63: #{va_model_forward.1} parent=47 // pred_fallthru
                _
              // Predicated region
              $region71: #{va_model_forward.1} parent=47 // pred_check
                _
              $region72: #{va_model_forward.1} parent=47 // pred_check_branch
                %653 = sbr.rel target = $region74
              $region73: #{va_model_forward.1} parent=47 // pred_region
                _
              $region74: #{va_model_forward.1} parent=47 // pred_fallthru
                _
            $region48: #{va_model_forward.1} parent=43 // pred_fallthru
              _
            // Predicated region
            $region49: #{va_model_forward.1} parent=43 // pred_check
              _
            $region50: #{va_model_forward.1} parent=43 // pred_check_branch
              %599 = sbr.rel target = $region52
            $region51: #{va_model_forward.1} parent=43 // pred_region
              %s601 = ssub.s32 256, 1
              loop: start=0, step=1, limit=1
              $region53: #{va_model_forward.1} parent=51 // loop_pre_header
                _
              $region54: #{va_model_forward.1} parent=51 // loop_header
                %s603 = sphi 0, %s607
                %p604 = scmp.ge.s32.totalorder %s603, 1
                %s608 = sphi %s586, %s586
                %s609 = sphi %s593, %s593
              $region55: #{va_model_forward.1} parent=51 // loop_header_branch
                %606 = sbr.rel (%p604) target = $region59
              $region56: #{va_model_forward.1} parent=51 // loop_body
                %v610 = vld [vmem:[%s608] sm:%s601]
                %611 = vst [vmem:[%s609] sm:%s601] %v610
                %v612 = vld [vmem:[%s608 + $0x8] sm:%s601]
                %613 = vst [vmem:[%s609 + $0x10] sm:%s601] %v612
                %v614 = vld [vmem:[%s608 + $0x10] sm:%s601]
                %615 = vst [vmem:[%s609 + $0x20] sm:%s601] %v614
                %v616 = vld [vmem:[%s608 + $0x18] sm:%s601]
                %617 = vst [vmem:[%s609 + $0x30] sm:%s601] %v616
                %v618 = vld [vmem:[%s608 + $0x20] sm:%s601]
                %619 = vst [vmem:[%s609 + $0x40] sm:%s601] %v618
                %v620 = vld [vmem:[%s608 + $0x28] sm:%s601]
                %621 = vst [vmem:[%s609 + $0x50] sm:%s601] %v620
                %v622 = vld [vmem:[%s608 + $0x30] sm:%s601]
                %623 = vst [vmem:[%s609 + $0x60] sm:%s601] %v622
                %v624 = vld [vmem:[%s608 + $0x38] sm:%s601]
                %625 = vst [vmem:[%s609 + $0x70] sm:%s601] %v624
              $region57: #{va_model_forward.1} parent=51 // loop_footer
                %s607 = sadd.s32 1, %s603
              $region58: #{va_model_forward.1} parent=51 // loop_footer_branch
                %602 = sbr.rel target = $region54
              $region59: #{va_model_forward.1} parent=51 // loop_exit
                _
            $region52: #{va_model_forward.1} parent=43 // pred_fallthru
              _
          $region44: #{va_model_forward.1} parent=39 // pred_fallthru
            _
          %654 = vnop
        $region40: #{va_model_forward.1} parent=35 // pred_fallthru
          _
      $region36: #{va_model_forward.1} parent=5 // pred_fallthru
        _
      %p655 = scmp.le.s32.totalorder 2, %s10
      // Predicated region
      $region75: #{va_model_forward.1} parent=5 // pred_check
        %p656 = pneg %p655
      $region76: #{va_model_forward.1} parent=5 // pred_check_branch
        %658 = sbr.rel (%p656) target = $region78
      $region77: #{va_model_forward.1} parent=5 // pred_region
        %s659 = ssub.s32 %s10, 2
        // Predicated region
        $region79: #{va_model_forward.1} parent=77 // pred_check
          %p660 = pneg %p144
        $region80: #{va_model_forward.1} parent=77 // pred_check_branch
          %662 = sbr.rel (%p660) target = $region82
        $region81: #{va_model_forward.1} parent=77 // pred_region
          %s663 = sand.u32 %s129, 1
          %s664 = sand.u32 %s129, 1
          %s665 = smul.addr %s664, 64
          %s666 = scalar_lea.vmem [#allocation3], %s665
        $region82: #{va_model_forward.1} parent=77 // pred_fallthru
          _
      $region78: #{va_model_forward.1} parent=5 // pred_fallthru
        _
    $region6: #{va_model_forward.1} parent=1 // loop_footer
      %s14 = sadd.s32 1, %s10
    $region7: #{va_model_forward.1} parent=1 // loop_footer_branch
      %9 = sbr.rel target = $region3
    $region8: #{va_model_forward.1} parent=1 // loop_exit
      _

</llo_original>
